<compile_context>
chip_gen: v7x
topology: tpu7x:2x2x1
jax: 0.10.0
libtpu: 0.0.40
codegen_flags: <defaults>
</compile_context>

<pallas_src>
import functools
import math

import jax
import jax.numpy as jnp
from jax.experimental import pallas as pl
from jax.experimental.pallas import tpu as pltpu


def _sublayer_connection_kernel(*refs, eps, dropout_rate, keep_threshold,
                                feature_dim, fused_fn, has_sx, has_bits):
    it = iter(refs)
    x_ref = next(it)
    sx_ref = next(it) if has_sx else None
    bits_ref = next(it) if has_bits else None
    g_ref = next(it)
    b_ref = next(it)
    o_ref = next(it)

    x = x_ref[...].astype(jnp.float32)                        # (TM, D) residual input
    if has_sx:
        sx = sx_ref[...].astype(jnp.float32)                  # precomputed sublayer(x)
    else:
        sx = fused_fn(x)                                      # elementwise sublayer fused in-kernel

    gamma = g_ref[...].astype(jnp.float32)                    # (1, D)
    beta = b_ref[...].astype(jnp.float32)                     # (1, D)

    d = feature_dim
    mean = jnp.mean(sx, axis=-1, keepdims=True)               # (TM, 1)
    centered = sx - mean
    # PyTorch x.std(-1) is the *unbiased* std (divides by N-1); eps is added to std.
    var_unbiased = jnp.sum(centered * centered, axis=-1, keepdims=True) / float(max(d - 1, 1))
    inv = 1.0 / (jnp.sqrt(var_unbiased) + eps)                # per-row (TM, 1) divide only
    normed = centered * (gamma * inv) + beta                  # mul + mul + add per element

    if has_bits:
        # Inverted dropout: integer threshold compare on precomputed uniform 23-bit ints.
        keep = bits_ref[...] >= keep_threshold
        normed = jnp.where(keep, normed * (1.0 / (1.0 - dropout_rate)), 0.0)

    o_ref[...] = (x + normed).astype(o_ref.dtype)


def sublayer_connection(x, gamma, beta, *, sublayer_out=None, sublayer_fn=None,
                        eps=1e-6, dropout_rate=0.1, rng_key=None,
                        tile_rows=None, vmem_budget_bytes=40 * 1024 * 1024):
    """out = x + dropout(LayerNorm(sublayer(x))).

    x: (..., D);  gamma, beta: (D,).
    Pass exactly one of:
      sublayer_out : precomputed sublayer(x), same shape as x (arbitrary sublayer).
      sublayer_fn  : simple elementwise jnp callable, fused inside the kernel.
    dropout_rate == 0.0 reproduces eval-mode semantics (no dropout).
    """
    if (sublayer_out is None) == (sublayer_fn is None):
        raise ValueError("pass exactly one of sublayer_out / sublayer_fn")

    *lead, D = x.shape
    rows = int(math.prod(lead)) if lead else 1
    x2 = x.reshape(rows, D)

    has_sx = sublayer_out is not None
    has_bits = dropout_rate > 0.0
    itemsize = jnp.dtype(x.dtype).itemsize

    inputs = [x2]
    if has_sx:
        inputs.append(sublayer_out.reshape(rows, D))
    if has_bits:
        if rng_key is None:
            rng_key = jax.random.PRNGKey(0)
        # Uniform integers in [0, 2^23): dropout mask = (bits >= p * 2^23).
        bits = jax.random.randint(rng_key, (rows, D), 0, 1 << 23, dtype=jnp.int32)
        inputs.append(bits)
    inputs.append(gamma.reshape(1, D))
    inputs.append(beta.reshape(1, D))

    # Pick the largest row tile whose double-buffered streams fit the VMEM budget
    # (budget chosen to also fit v7x's 64 MiB VMEM with headroom).
    n_data_streams = 3 if has_sx else 2        # x, (sx), out
    bytes_per_row = D * (itemsize * n_data_streams + (4 if has_bits else 0))
    if tile_rows is None:
        max_rows = max(8, vmem_budget_bytes // (2 * bytes_per_row))
        tile_rows = int(min(1024, max_rows))
    if tile_rows >= rows:
        tile_rows = rows
    else:
        tile_rows = max(8, (tile_rows // 8) * 8)

    grid = (pl.cdiv(rows, tile_rows),)

    row_spec = pl.BlockSpec((tile_rows, D), lambda i: (i, 0))
    vec_spec = pl.BlockSpec((1, D), lambda i: (0, 0))
    in_specs = [row_spec]
    if has_sx:
        in_specs.append(row_spec)
    if has_bits:
        in_specs.append(row_spec)
    in_specs += [vec_spec, vec_spec]

    keep_threshold = int(round(dropout_rate * (1 << 23))) if has_bits else 0
    kernel = functools.partial(
        _sublayer_connection_kernel,
        eps=float(eps), dropout_rate=float(dropout_rate),
        keep_threshold=keep_threshold, feature_dim=D,
        fused_fn=sublayer_fn, has_sx=has_sx, has_bits=has_bits)

    out = pl.pallas_call(
        kernel,
        out_shape=jax.ShapeDtypeStruct((rows, D), x.dtype),
        grid_spec=pltpu.PrefetchScalarGridSpec(
            num_scalar_prefetch=0,
            grid=grid,
            in_specs=in_specs,
            out_specs=row_spec,
        ),
        compiler_params=pltpu.CompilerParams(
            # Rows are independent (dropout bits precomputed) -> let v7x shard across TCs.
            dimension_semantics=("parallel",),
            vmem_limit_bytes=64 * 1024 * 1024,
        ),
    )(*inputs)

    return out.reshape(x.shape)


def _reference_eval(x, sx, gamma, beta, eps=1e-6):
    """Pure-JAX reference of x + LayerNorm(sublayer(x)) (dropout disabled)."""
    mean = jnp.mean(sx, axis=-1, keepdims=True)
    centered = sx - mean
    std = jnp.sqrt(jnp.sum(centered * centered, axis=-1, keepdims=True)
                   / (sx.shape[-1] - 1))
    return x + gamma * centered / (std + eps) + beta


if __name__ == "__main__":
    B, S, D = 2, 8, 32
    key = jax.random.PRNGKey(0)
    kx, kdrop = jax.random.split(key)
    x = jax.random.normal(kx, (B, S, D), dtype=jnp.float32)

    # LayerNorm parameters at their nn.Parameter init values (ones / zeros).
    gamma = jnp.ones((D,), dtype=jnp.float32)
    beta = jnp.zeros((D,), dtype=jnp.float32)

    # The sublayer callable — here a simple elementwise fn, so it is fused in-kernel.
    sublayer = jnp.tanh
    sx = sublayer(x)

    # Training semantics: dropout p=0.1 with a deterministic key, sublayer fused.
    y_train = sublayer_connection(x, gamma, beta, sublayer_fn=sublayer,
                                  dropout_rate=0.1, rng_key=kdrop)
    y_train = jax.block_until_ready(y_train)
    assert y_train.shape == x.shape
    assert bool(jnp.all(jnp.isfinite(y_train)))

    # Eval semantics (dropout off): both the fused path and the precomputed-sublayer
    # path must match the pure-JAX reference.
    y_eval_fused = sublayer_connection(x, gamma, beta, sublayer_fn=sublayer,
                                       dropout_rate=0.0)
    y_eval_pre = sublayer_connection(x, gamma, beta, sublayer_out=sx,
                                     dropout_rate=0.0)
    y_ref = _reference_eval(x, sx, gamma, beta)
    assert jnp.allclose(y_eval_fused, y_ref, atol=1e-5, rtol=1e-5), "fused path mismatch"
    assert jnp.allclose(y_eval_pre, y_ref, atol=1e-5, rtol=1e-5), "precomputed path mismatch"

    print("KERNEL_OK")
</pallas_src>

<mosaic_0001>
module attributes {stable_mosaic.version = 11 : i64} {
  func.func @_sublayer_connection_kernel(%arg0: i32, %arg1: memref<16x32xf32, #tpu.memory_space<vmem>>, %arg2: memref<16x32xi32, #tpu.memory_space<vmem>>, %arg3: memref<1x32xf32, #tpu.memory_space<vmem>>, %arg4: memref<1x32xf32, #tpu.memory_space<vmem>>, %arg5: memref<16x32xf32, #tpu.memory_space<vmem>>) attributes {dimension_semantics = [#tpu.dimension_semantics<parallel>], iteration_bounds = array<i64: 1>, scalar_prefetch = 0 : i64, scratch_operands = 0 : i64, tpu.core_type = #tpu.core_type<tc>, window_params = [{transform_indices = @transform_0, window_bounds = array<i64: 16, 32>}, {transform_indices = @transform_1, window_bounds = array<i64: 16, 32>}, {pipeline_mode = #tpu.pipeline_mode<synchronous>, transform_indices = @transform_2, window_bounds = array<i64: 1, 32>}, {pipeline_mode = #tpu.pipeline_mode<synchronous>, transform_indices = @transform_3, window_bounds = array<i64: 1, 32>}, {transform_indices = @transform_4, window_bounds = array<i64: 16, 32>}]} {
    %c0 = arith.constant 0 : index
    %c0_0 = arith.constant 0 : index
    %0 = vector.load %arg1[%c0, %c0_0] : memref<16x32xf32, #tpu.memory_space<vmem>>, vector<16x32xf32>
    %1 = math.tanh %0 : vector<16x32xf32>
    %c0_1 = arith.constant 0 : index
    %c0_2 = arith.constant 0 : index
    %2 = vector.load %arg3[%c0_1, %c0_2] : memref<1x32xf32, #tpu.memory_space<vmem>>, vector<1x32xf32>
    %c0_3 = arith.constant 0 : index
    %c0_4 = arith.constant 0 : index
    %3 = vector.load %arg4[%c0_3, %c0_4] : memref<1x32xf32, #tpu.memory_space<vmem>>, vector<1x32xf32>
    %cst = arith.constant dense<0.000000e+00> : vector<16xf32>
    %4 = vector.multi_reduction <add>, %1, %cst [1] : vector<16x32xf32> to vector<16xf32>
    %5 = vector.shape_cast %4 : vector<16xf32> to vector<16x1xf32>
    %cst_5 = arith.constant 3.200000e+01 : f32
    %6 = vector.broadcast %cst_5 : f32 to vector<16x1xf32>
    %7 = arith.divf %5, %6 : vector<16x1xf32>
    %8 = vector.broadcast %7 : vector<16x1xf32> to vector<16x32xf32>
    %9 = arith.subf %1, %8 : vector<16x32xf32>
    %10 = arith.mulf %9, %9 : vector<16x32xf32>
    %cst_6 = arith.constant dense<0.000000e+00> : vector<16xf32>
    %11 = vector.multi_reduction <add>, %10, %cst_6 [1] : vector<16x32xf32> to vector<16xf32>
    %12 = vector.shape_cast %11 : vector<16xf32> to vector<16x1xf32>
    %cst_7 = arith.constant 3.100000e+01 : f32
    %13 = vector.broadcast %cst_7 : f32 to vector<16x1xf32>
    %14 = arith.divf %12, %13 : vector<16x1xf32>
    %15 = math.sqrt %14 : vector<16x1xf32>
    %cst_8 = arith.constant 9.99999997E-7 : f32
    %16 = vector.broadcast %cst_8 : f32 to vector<16x1xf32>
    %17 = arith.addf %15, %16 : vector<16x1xf32>
    %cst_9 = arith.constant 1.000000e+00 : f32
    %18 = vector.broadcast %cst_9 : f32 to vector<16x1xf32>
    %19 = arith.divf %18, %17 : vector<16x1xf32>
    %20 = vector.broadcast %2 : vector<1x32xf32> to vector<16x32xf32>
    %21 = vector.broadcast %19 : vector<16x1xf32> to vector<16x32xf32>
    %22 = arith.mulf %20, %21 : vector<16x32xf32>
    %23 = arith.mulf %9, %22 : vector<16x32xf32>
    %24 = vector.broadcast %3 : vector<1x32xf32> to vector<16x32xf32>
    %25 = arith.addf %23, %24 : vector<16x32xf32>
    %c0_10 = arith.constant 0 : index
    %c0_11 = arith.constant 0 : index
    %26 = vector.load %arg2[%c0_10, %c0_11] : memref<16x32xi32, #tpu.memory_space<vmem>>, vector<16x32xi32>
    %c838861_i32 = arith.constant 838861 : i32
    %27 = vector.broadcast %c838861_i32 : i32 to vector<16x32xi32>
    %28 = arith.cmpi sge, %26, %27 : vector<16x32xi32>
    %cst_12 = arith.constant 1.11111116 : f32
    %29 = vector.broadcast %cst_12 : f32 to vector<16x32xf32>
    %30 = arith.mulf %25, %29 : vector<16x32xf32>
    %cst_13 = arith.constant 0.000000e+00 : f32
    %31 = vector.broadcast %cst_13 : f32 to vector<16x32xf32>
    %32 = arith.select %28, %30, %31 : vector<16x32xi1>, vector<16x32xf32>
    %33 = arith.addf %0, %32 : vector<16x32xf32>
    %c0_14 = arith.constant 0 : index
    %c0_15 = arith.constant 0 : index
    %34 = vector.load %arg5[%c0_14, %c0_15] : memref<16x32xf32, #tpu.memory_space<vmem>>, vector<16x32xf32>
    tpu.vector_store %arg5[%c0_14, %c0_15], %33 {strides = array<i32>} : memref<16x32xf32, #tpu.memory_space<vmem>>, vector<16x32xf32>,
    return
  }
  func.func @transform_0(%arg0: i32) -> (i32, i32) {
    %c0_i32 = arith.constant 0 : i32
    %c0_i32_0 = arith.constant 0 : i32
    return %arg0, %c0_i32 : i32, i32
  }
  func.func @transform_1(%arg0: i32) -> (i32, i32) {
    %c0_i32 = arith.constant 0 : i32
    %c0_i32_0 = arith.constant 0 : i32
    return %arg0, %c0_i32 : i32, i32
  }
  func.func @transform_2(%arg0: i32) -> (i32, i32) {
    %c0_i32 = arith.constant 0 : i32
    %c0_i32_0 = arith.constant 0 : i32
    %c0_i32_1 = arith.constant 0 : i32
    return %c0_i32, %c0_i32_0 : i32, i32
  }
  func.func @transform_3(%arg0: i32) -> (i32, i32) {
    %c0_i32 = arith.constant 0 : i32
    %c0_i32_0 = arith.constant 0 : i32
    %c0_i32_1 = arith.constant 0 : i32
    return %c0_i32, %c0_i32_0 : i32, i32
  }
  func.func @transform_4(%arg0: i32) -> (i32, i32) {
    %c0_i32 = arith.constant 0 : i32
    %c0_i32_0 = arith.constant 0 : i32
    return %arg0, %c0_i32 : i32, i32
  }
}

</mosaic_0001>

<llo_original>
// kernel: tpu_custom_call.1
$region0: #{tpu_custom_call.1}
  #allocation0 [shape = 'u32[]', space=smem, size = 0x4, offset = 0x4, fixed_abs, tag = 'smem constant byte address 0x4 - core index']
  #allocation1 [shape = 'u32[144,128]{1,0:T(1,128)}', space=vmem, size = 0x12000, scoped, tag = 'internal scratch']
  %s0 = inlined_call_operand.hbm [shape: f32[16,32], index: 0, kind: input, shape index: {}]
  %s1 = inlined_call_operand.hbm [shape: s32[16,32], index: 1, kind: input, shape index: {}]
  %s2 = inlined_call_operand.hbm [shape: f32[1,32], index: 2, kind: input, shape index: {}]
  %s3 = inlined_call_operand.hbm [shape: f32[1,32], index: 3, kind: input, shape index: {}]
  %s4 = inlined_call_operand.hbm [shape: f32[16,32], index: 4, kind: output, shape index: {}]
  %s5 = sld [smem:[#allocation0]]
  $region42: #{tpu_custom_call.1} parent=0
    _
  %s7 = ssub.s32 1, %s5
  %s8 = scalar_select 0, %s7, %s5
  $region1: #{tpu_custom_call.1} parent=0
    #allocation2 [shape = 'u8[8192]{0}', space=vmem, size = 0x2000, scoped, tag = 'input window, operand 0, single buffered']
    #allocation3 [shape = 's32[1]{0}', space=sflag, size = 0x4, scoped, tag = 'scoped memory for tpu_custom_call.1']
    #allocation4 [shape = 's32[1]{0}', space=sflag, size = 0x4, scoped, tag = 'scoped memory for tpu_custom_call.1']
    #allocation5 [shape = 'u8[8192]{0}', space=vmem, size = 0x2000, scoped, tag = 'input window, operand 1, single buffered']
    #allocation6 [shape = 's32[1]{0}', space=sflag, size = 0x4, scoped, tag = 'scoped memory for tpu_custom_call.1']
    #allocation7 [shape = 'u8[512]{0}', space=vmem, size = 0x400, scoped, tag = 'input window, operand 2, single buffered']
    #allocation8 [shape = 'u8[512]{0}', space=vmem, size = 0x400, scoped, tag = 'input window, operand 3, single buffered']
    #allocation9 [shape = 's32[1]{0}', space=sflag, size = 0x4, scoped, tag = 'scoped memory for tpu_custom_call.1']
    #allocation10 [shape = 'u8[8192]{0}', space=vmem, size = 0x2000, scoped, tag = 'output window, operand 0, single buffered']
    %9 = vsyncpa [#allocation3], 0
    %10 = vsyncpa [#allocation6], 0
    %11 = vsyncpa [#allocation9], 0
    %12 = vsyncpa [#allocation4], 0
    // Predicated region
    $region2: #{tpu_custom_call.1} parent=1 // pred_check
      _
    $region3: #{tpu_custom_call.1} parent=1 // pred_check_branch
      %14 = sbr.rel (0) target = $region5
    $region4: #{tpu_custom_call.1} parent=1 // pred_region
      %s16 = ssub.s32 256, 256
      %17 = vsyncadd [#allocation3], %s16
      %s18 = sshll.u32 [#allocation2], 4
      %s19 = int_to_ptr.vmem [resolvable:$true] %s18
      %24 = dma.hbm_to_vmem [thread:$0]  %s0, 256, %s19, [#allocation3], 128, 128, 8
    $region5: #{tpu_custom_call.1} parent=1 // pred_fallthru
      _
    // Predicated region
    $region6: #{tpu_custom_call.1} parent=1 // pred_check
      _
    $region7: #{tpu_custom_call.1} parent=1 // pred_check_branch
      %26 = sbr.rel (0) target = $region9
    $region8: #{tpu_custom_call.1} parent=1 // pred_region
      %s28 = ssub.s32 256, 256
      %29 = vsyncadd [#allocation6], %s28
      %s30 = sshll.u32 [#allocation5], 4
      %s31 = int_to_ptr.vmem [resolvable:$true] %s30
      %36 = dma.hbm_to_vmem [thread:$0]  %s1, 256, %s31, [#allocation6], 128, 128, 8
    $region9: #{tpu_custom_call.1} parent=1 // pred_fallthru
      _
    // Predicated region
    $region10: #{tpu_custom_call.1} parent=1 // pred_check
      _
    $region11: #{tpu_custom_call.1} parent=1 // pred_check_branch
      %38 = sbr.rel (0) target = $region13
    $region12: #{tpu_custom_call.1} parent=1 // pred_region
      %s40 = ssub.s32 16, 16
      %41 = vsyncadd [#allocation6], %s40
      %s43 = sshll.u32 [#allocation7], 4
      %s44 = int_to_ptr.vmem [resolvable:$true] %s43
      %46 = dma.hbm_to_vmem [thread:$0]  %s2, 16, %s44, [#allocation6]
    $region13: #{tpu_custom_call.1} parent=1 // pred_fallthru
      _
    // Predicated region
    $region14: #{tpu_custom_call.1} parent=1 // pred_check
      _
    $region15: #{tpu_custom_call.1} parent=1 // pred_check_branch
      %48 = sbr.rel (0) target = $region17
    $region16: #{tpu_custom_call.1} parent=1 // pred_region
      %s50 = ssub.s32 16, 16
      %51 = vsyncadd [#allocation9], %s50
      %s53 = sshll.u32 [#allocation8], 4
      %s54 = int_to_ptr.vmem [resolvable:$true] %s53
      %56 = dma.hbm_to_vmem [thread:$0]  %s3, 16, %s54, [#allocation9]
    $region17: #{tpu_custom_call.1} parent=1 // pred_fallthru
      _
    // Predicated region
    $region18: #{tpu_custom_call.1} parent=1 // pred_check
      _
    $region19: #{tpu_custom_call.1} parent=1 // pred_check_branch
      %58 = sbr.rel (0) target = $region21
    $region20: #{tpu_custom_call.1} parent=1 // pred_region
      %59 = dma.done [#allocation3], 256
    $region21: #{tpu_custom_call.1} parent=1 // pred_fallthru
      _
    // Predicated region
    $region22: #{tpu_custom_call.1} parent=1 // pred_check
      _
    $region23: #{tpu_custom_call.1} parent=1 // pred_check_branch
      %61 = sbr.rel (0) target = $region25
    $region24: #{tpu_custom_call.1} parent=1 // pred_region
      %62 = dma.done [#allocation6], 256
    $region25: #{tpu_custom_call.1} parent=1 // pred_fallthru
      _
    // Predicated region
    $region26: #{tpu_custom_call.1} parent=1 // pred_check
      _
    $region27: #{tpu_custom_call.1} parent=1 // pred_check_branch
      %64 = sbr.rel (0) target = $region29
    $region28: #{tpu_custom_call.1} parent=1 // pred_region
      %65 = dma.done [#allocation6], 16
    $region29: #{tpu_custom_call.1} parent=1 // pred_fallthru
      _
    // Predicated region
    $region30: #{tpu_custom_call.1} parent=1 // pred_check
      _
    $region31: #{tpu_custom_call.1} parent=1 // pred_check_branch
      %67 = sbr.rel (0) target = $region33
    $region32: #{tpu_custom_call.1} parent=1 // pred_region
      %68 = dma.done [#allocation9], 16
    $region33: #{tpu_custom_call.1} parent=1 // pred_fallthru
      _
    %v69 = vld [vmem:[#allocation2] sm:$0xff]
    %v70 = vld [vmem:[#allocation2 + $0x8] sm:$0xff]
    %v71 = vtanh.pop %v69
    %v72 = vtanh.pop %v70
    %v73 = vld [vmem:[#allocation7] sm:$0x1]
    %v74 = vld [vmem:[#allocation8] sm:$0x1]
    %vm75 = vcmask 261120
    %v76 = vsel %vm75, %v71, 0.0
    %77 = vadd.xlane.f32.xlu0 %v76
    %v78 = vpop.xlane.xlu0 %77
    %v79 = vsel %vm75, %v72, 0.0
    %80 = vadd.xlane.f32.xlu0 %v79
    %v81 = vpop.xlane.xlu0 %80
    %v82 = vrcp.pop 32.0
    %v83 = vmul.f32 %v78, %v82
    %v84 = vmul.f32 %v81, %v82
    %v85 = vsub.f32 %v71, %v83
    %v86 = vsub.f32 %v72, %v84
    %v87 = vmul.f32 %v85, %v85
    %v88 = vmul.f32 %v86, %v86
    %v89 = vsel %vm75, %v87, 0.0
    %90 = vadd.xlane.f32.xlu0 %v89
    %v91 = vpop.xlane.xlu0 %90
    %v92 = vsel %vm75, %v88, 0.0
    %93 = vadd.xlane.f32.xlu0 %v92
    %v94 = vpop.xlane.xlu0 %93
    %v95 = vrcp.pop 31.0
    %v96 = vmul.f32 %v91, %v95
    %v97 = vmul.f32 %v94, %v95
    %v98 = vrsqrt.pop %v96
    %v99 = vmul.f32 %v96, %v98
    %vm100 = vcmp.eq.f32.partialorder %v96, inf
    %v101 = vsel %vm100, %v96, %v99
    %vm102 = vcmp.eq.f32.partialorder %v96, 0.0
    %v103 = vand.u32 %v96, 2147483648
    %v104 = vsel %vm102, %v103, %v101
    %v105 = vrsqrt.pop %v97
    %v106 = vmul.f32 %v97, %v105
    %vm107 = vcmp.eq.f32.partialorder %v97, inf
    %v108 = vsel %vm107, %v97, %v106
    %vm109 = vcmp.eq.f32.partialorder %v97, 0.0
    %v110 = vand.u32 %v97, 2147483648
    %v111 = vsel %vm109, %v110, %v108
    %v112 = vadd.f32 %v104, 1e-06
    %v113 = vadd.f32 %v111, 1e-06
    %v114 = vrcp.pop %v112
    %v115 = vmul.f32 1.0, %v114
    %v116 = vrcp.pop %v113
    %v117 = vmul.f32 1.0, %v116
    %v119 = vlaneseq
    %v120 = vshrl.u32 %v119, 7
    %v121 = vsub.s32 0, %v120
    %v122 = vrot.slane %v73, %v121
    %v124 = vmul.f32 %v122, %v115
    %v125 = vmul.f32 %v122, %v117
    %v126 = vmul.f32 %v85, %v124
    %v127 = vmul.f32 %v86, %v125
    %v129 = vlaneseq
    %v130 = vshrl.u32 %v129, 7
    %v131 = vsub.s32 0, %v130
    %v132 = vrot.slane %v74, %v131
    %v134 = vadd.f32 %v126, %v132
    %v135 = vadd.f32 %v127, %v132
    %v136 = vld [vmem:[#allocation5] sm:$0xff]
    %v137 = vld [vmem:[#allocation5 + $0x8] sm:$0xff]
    %vm138 = vcmp.ge.s32.totalorder %v136, 838861
    %vm139 = vcmp.ge.s32.totalorder %v137, 838861
    %v140 = vmul.f32 %v134, 1.1111112
    %v141 = vmul.f32 %v135, 1.1111112
    %v142 = vsel %vm138, %v140, 0.0
    %v143 = vsel %vm139, %v141, 0.0
    %v144 = vadd.f32 %v69, %v142
    %v145 = vadd.f32 %v70, %v143
    %146 = vst.msk [vmem:[#allocation10] sm:$0xff] %vm75, %v144
    %147 = vst.msk [vmem:[#allocation10 + $0x8] sm:$0xff] %vm75, %v145
    // Predicated region
    $region34: #{tpu_custom_call.1} parent=1 // pred_check
      _
    $region35: #{tpu_custom_call.1} parent=1 // pred_check_branch
      %149 = sbr.rel (0) target = $region37
    $region36: #{tpu_custom_call.1} parent=1 // pred_region
      %s151 = ssub.s32 256, 256
      %152 = vsyncadd [#allocation4], %s151
      %s153 = sshll.u32 [#allocation10], 4
      %s154 = int_to_ptr.vmem [resolvable:$true] %s153
      %159 = dma.vmem_to_hbm [thread:$0]  %s154, 256, %s4, [#allocation4], 128, 128, 8
    $region37: #{tpu_custom_call.1} parent=1 // pred_fallthru
      _
    // Predicated region
    $region38: #{tpu_custom_call.1} parent=1 // pred_check
      _
    $region39: #{tpu_custom_call.1} parent=1 // pred_check_branch
      %161 = sbr.rel (0) target = $region41
    $region40: #{tpu_custom_call.1} parent=1 // pred_region
      %162 = dma.done [#allocation4], 256
    $region41: #{tpu_custom_call.1} parent=1 // pred_fallthru
      _
    %163 = vsyncpa [#allocation3], 1
    %164 = vsyncpa [#allocation6], 1
    %165 = vsyncpa [#allocation9], 1
    %166 = vsyncpa [#allocation4], 1

</llo_original>
